<compile_context>
chip_gen: v5e
topology: v5e:2x2
jax: 0.10.0
libtpu: 0.0.40
codegen_flags: <defaults>
</compile_context>

<pallas_src>
import functools

import numpy as np
import jax
import jax.numpy as jnp
from jax import lax
from jax.experimental import pallas as pl
from jax.experimental.pallas import tpu as pltpu


def _round_up(x, m):
    return ((x + m - 1) // m) * m


@functools.lru_cache(maxsize=None)
def _vmem_budget():
    """Generation-aware VMEM sizing: (compiler vmem_limit_bytes, planning budget)."""
    cap = 64 * 1024 * 1024
    try:
        cap = int(pltpu.get_tpu_info().vmem_capacity_bytes)
    except Exception:
        pass
    if cap >= 128 * 1024 * 1024:                      # v5e / v6e: 128 MiB
        return 100 * 1024 * 1024, 80 * 1024 * 1024
    return 48 * 1024 * 1024, 36 * 1024 * 1024         # v7x (64 MiB) or unknown


def _pick_tm(m, n_fft, f_pad, budget_bytes):
    """Largest frame-row tile whose VMEM footprint fits the budget."""
    basis = n_fft * (2 * f_pad) * 2                   # fused [C|S] bf16, SINGLE copy
    best = 8
    for cand in (512, 384, 256, 192, 128, 96, 64, 32, 16, 8):
        frames = 2 * (2 * cand * n_fft * 2)           # (2*tm, n_fft) bf16, double-buffered
        temps = 40 * cand * f_pad                     # f32 matmul result + epilogue temps
        if basis + frames + temps <= budget_bytes:
            best = cand
            break
    return min(best, max(8, _round_up(m, 8)))


# --------------------------------------------------------------------------- #
# Pallas kernel: one row-tile (generated stacked on real) for one STFT scale.
# --------------------------------------------------------------------------- #
def _stft_loss_kernel(fr_ref, cs_ref, out_ref, *, tm, f_pad):
    """Per-tile STFT-loss partial sums.

    fr_ref  : (2*tm, n_fft)    bf16; rows [0:tm] generated frames, [tm:2*tm] real
    cs_ref  : (n_fft, 2*f_pad) bf16 fused [cos | sin] basis (window folded in),
              whole array resident in VMEM (single copy, untiled)
    out_ref : (1, 3, f_pad)    f32 per-tile, per-lane partial sums:
              [ sum |log|Y|-log|Yhat|| , sum (|Y|-|Yhat|)^2 , sum |Y|^2 ]
    """
    # ONE matmul for both signals: the shared RHS weight load is amortized over 2*tm rows.
    z = jnp.dot(fr_ref[...], cs_ref[...], preferred_element_type=jnp.float32)

    zh, zy = z[:tm], z[tm:]                       # tm is a multiple of 8: layout-free split
    rh, ih = zh[:, :f_pad], zh[:, f_pad:]
    ry, iy = zy[:, :f_pad], zy[:, f_pad:]

    pc_h = jnp.maximum(rh * rh + ih * ih, 1e-8)   # clamped power == |Yhat|^2
    pc_y = jnp.maximum(ry * ry + iy * iy, 1e-8)   # clamped power == |Y|^2

    mag_h = jnp.sqrt(pc_h)
    mag_y = jnp.sqrt(pc_y)

    # |log|Y| - log|Yhat|| == 0.5*|log(pc_y / pc_h)| : one log + one reciprocal (EUP).
    log_l1 = 0.5 * jnp.abs(jnp.log(pc_y * pl.reciprocal(pc_h)))
    diff = mag_y - mag_h

    # Reduce over rows only (sublane axis); direct stores, no concat temporary.
    out_ref[0, 0:1, :] = jnp.sum(log_l1, axis=0, keepdims=True)
    out_ref[0, 1:2, :] = jnp.sum(diff * diff, axis=0, keepdims=True)
    out_ref[0, 2:3, :] = jnp.sum(pc_y, axis=0, keepdims=True)


# --------------------------------------------------------------------------- #
# Per-scale wrapper (jitted): framing gather + pallas_call + final scalars.
# --------------------------------------------------------------------------- #
@functools.partial(jax.jit, static_argnames=("n_fft", "hop_length", "f_bins", "f_pad"))
def _stft_loss_single(x_hat, x, cs, *, n_fft, hop_length, f_bins, f_pad):
    """One STFT scale on (B, L) waveforms. Returns (loss_mag, loss_sc)."""
    B, L = x.shape
    pad = n_fft // 2
    Lp = L + 2 * pad

    # torch.stft(center=True, pad_mode='reflect'). Generated & real are stacked so the
    # framing gather, the bf16 cast and the kernel matmul all run once over both signals.
    x2 = jnp.stack([x_hat, x], axis=0).reshape(2 * B, L)
    xp = jnp.pad(x2, ((0, 0), (pad, pad)), mode="reflect")              # (2B, Lp)
    xp = jnp.concatenate([xp, jnp.zeros((1, Lp), xp.dtype)], axis=0)    # zero row for pad frames

    n_frames = 1 + (Lp - n_fft) // hop_length
    m = B * n_frames

    vmem_limit, budget = _vmem_budget()
    tm = _pick_tm(m, n_fft, f_pad, budget)
    if _round_up(m, tm) // tm < 2 and m > 8:     # keep >=2 grid steps (v7x has 2 TCs)
        tm = _round_up((m + 1) // 2, 8)
    mp = _round_up(m, tm)
    grid_m = mp // tm

    # Static row layout: tile-interleaved [hat-tile_i ; real-tile_i] so each grid block
    # is one contiguous (2*tm, n_fft) slab. Padding rows (rr >= m) read the zero row,
    # so no separate jnp.pad of the expanded frames tensor is needed.
    rows = np.arange(2 * mp)
    tile, within = rows // (2 * tm), rows % (2 * tm)
    sig, local = within // tm, within % tm       # sig: 0 = generated, 1 = real
    rr = tile * tm + local
    valid = rr < m
    b, f = rr // n_frames, rr % n_frames
    row_ids = jnp.asarray(np.where(valid, sig * B + b, 2 * B), dtype=jnp.int32)
    col0 = jnp.asarray(np.where(valid, f * hop_length, 0), dtype=jnp.int32)

    def _frame(r, c):
        return lax.dynamic_slice(xp, (r, c), (1, n_fft))[0]

    # vmapped dynamic_slice lowers to a single gather with (2*mp, 2) start indices.
    frames = jax.vmap(_frame)(row_ids, col0).astype(jnp.bfloat16)       # (2*mp, n_fft)

    partials = pl.pallas_call(
        functools.partial(_stft_loss_kernel, tm=tm, f_pad=f_pad),
        out_shape=jax.ShapeDtypeStruct((grid_m, 3, f_pad), jnp.float32),
        grid=(grid_m,),
        in_specs=[
            pl.BlockSpec((2 * tm, n_fft), lambda i: (i, 0)),
            pl.BlockSpec(memory_space=pltpu.MemorySpace.VMEM),  # whole basis, single copy
        ],
        out_specs=pl.BlockSpec((1, 3, f_pad), lambda i: (i, 0, 0)),
        compiler_params=pltpu.CompilerParams(
            dimension_semantics=("parallel",),
            vmem_limit_bytes=vmem_limit,
        ),
    )(frames, cs)

    sums = jnp.sum(partials, axis=(0, 2))                               # (3,) f32

    # Padded rows / padded frequency lanes contribute exactly 0 to the log-L1 and
    # magnitude-diff sums, and exactly 1e-8 per cell to sum|Y|^2: subtract analytically.
    n_valid = m * f_bins
    spurious_sq_y = (mp * f_pad - n_valid) * 1e-8

    loss_mag = sums[0] / jnp.float32(n_valid)                           # F.l1_loss (mean)
    sq_y = jnp.maximum(sums[2] - spurious_sq_y, 1e-30)
    loss_sc = jnp.sqrt(sums[1]) / jnp.sqrt(sq_y)                        # fro-norm ratio
    return loss_mag, loss_sc


# --------------------------------------------------------------------------- #
# Multi-scale STFT loss (matches speechbrain MultiScaleSTFTLoss, no parameters).
# --------------------------------------------------------------------------- #
def _build_cs_basis(n_fft, win_length, f_bins, f_pad):
    """Fused [cos | sin] one-sided DFT basis with the rectangular window folded in
    (torch.stft(window=None)), zero-padded to a lane-dense frequency count."""
    window = np.zeros((n_fft,), dtype=np.float64)
    left = (n_fft - win_length) // 2
    window[left:left + win_length] = 1.0
    k = np.arange(n_fft, dtype=np.float64)[:, None]
    f = np.arange(f_bins, dtype=np.float64)[None, :]
    ang = 2.0 * np.pi * k * f / float(n_fft)
    c = window[:, None] * np.cos(ang)
    s = window[:, None] * np.sin(ang)                 # sign irrelevant for |X|
    cs = np.zeros((n_fft, 2 * f_pad), dtype=np.float32)
    cs[:, :f_bins] = c
    cs[:, f_pad:f_pad + f_bins] = s
    return jnp.asarray(cs, dtype=jnp.bfloat16)


class MultiScaleSTFTLossPallas:
    """JAX/Pallas port of speechbrain's MultiScaleSTFTLoss. Inputs are (B, L)."""

    def __init__(self,
                 n_ffts=(1024, 2048, 512),
                 hop_lengths=(120, 240, 50),
                 win_lengths=(600, 1200, 240)):
        self.scales = []
        for n_fft, hop, win in zip(n_ffts, hop_lengths, win_lengths):
            f_bins = n_fft // 2 + 1
            f_pad = _round_up(f_bins, 128)
            cs = _build_cs_basis(n_fft, win, f_bins, f_pad)
            self.scales.append((n_fft, hop, f_bins, f_pad, cs))

    def __call__(self, y_hat, y):
        n = len(self.scales)
        loss_mag = jnp.float32(0.0)
        loss_sc = jnp.float32(0.0)
        for n_fft, hop, f_bins, f_pad, cs in self.scales:
            lm, lsc = _stft_loss_single(
                y_hat, y, cs,
                n_fft=n_fft, hop_length=hop, f_bins=f_bins, f_pad=f_pad)
            loss_mag = loss_mag + lm
            loss_sc = loss_sc + lsc
        return loss_mag / n, loss_sc / n


# --------------------------------------------------------------------------- #
# GeneratorLoss: composition / weighting logic (mirrors the PyTorch module).
# --------------------------------------------------------------------------- #
def _apply_G_adv_loss(scores_fake, loss_func):
    adv_loss = jnp.float32(0.0)
    if isinstance(scores_fake, list):
        for score_fake in scores_fake:
            adv_loss = adv_loss + loss_func(score_fake)
    else:
        adv_loss = loss_func(scores_fake)
    return adv_loss


class GeneratorLossPallas:
    """JAX port of GeneratorLoss: weights and sums sub-losses (no parameters).
    The multi-resolution STFT loss runs as a Pallas TPU kernel; the other loss
    slots accept arbitrary JAX callables exactly like the torch module."""

    def __init__(self, stft_loss=None, stft_loss_weight=0.0,
                 mseg_loss=None, mseg_loss_weight=0.0,
                 feat_match_loss=None, feat_match_loss_weight=0.0,
                 l1_spec_loss=None, l1_spec_loss_weight=0.0,
                 mseg_dur_loss=None, mseg_dur_loss_weight=0.0):
        self.stft_loss = stft_loss
        self.stft_loss_weight = stft_loss_weight
        self.mseg_loss = mseg_loss
        self.mseg_loss_weight = mseg_loss_weight
        self.feat_match_loss = feat_match_loss
        self.feat_match_loss_weight = feat_match_loss_weight
        self.l1_spec_loss = l1_spec_loss
        self.l1_spec_loss_weight = l1_spec_loss_weight
        self.mseg_dur_loss = mseg_dur_loss
        self.mseg_dur_loss_weight = mseg_dur_loss_weight

    def __call__(self, stage=None, y_hat=None, y=None, scores_fake=None,
                 feats_fake=None, feats_real=None, log_dur_pred=None, log_dur=None):
        gen_loss = jnp.float32(0.0)
        adv_loss = jnp.float32(0.0)
        dur_loss = jnp.float32(0.0)
        loss = {}
        if self.stft_loss is not None:
            L = y.shape[2]
            stft_loss_mg, stft_loss_sc = self.stft_loss(y_hat[:, 0, :L], y[:, 0, :])
            loss["G_stft_loss_mg"] = stft_loss_mg
            loss["G_stft_loss_sc"] = stft_loss_sc
            gen_loss = gen_loss + self.stft_loss_weight * (stft_loss_mg + stft_loss_sc)
        if self.l1_spec_loss is not None:
            l1 = self.l1_spec_loss(y_hat, y)
            loss["G_l1_spec_loss"] = l1
            gen_loss = gen_loss + self.l1_spec_loss_weight * l1
        if self.mseg_loss is not None and scores_fake is not None:
            mse_fake_loss = _apply_G_adv_loss(scores_fake, self.mseg_loss)
            loss["G_mse_fake_loss"] = mse_fake_loss
            adv_loss = adv_loss + self.mseg_loss_weight * mse_fake_loss
        if self.feat_match_loss is not None and feats_fake is not None:
            fm = self.feat_match_loss(feats_fake, feats_real)
            loss["G_feat_match_loss"] = fm
            adv_loss = adv_loss + self.feat_match_loss_weight * fm
        # TODO(synk): torch checks `stage == sb.Stage.TRAIN`; we use the string "train".
        if self.mseg_dur_loss is not None and stage == "train":
            d = jnp.mean((log_dur_pred - log_dur) ** 2)
            loss["G_dur_loss"] = d
            dur_loss = d * self.mseg_dur_loss_weight
        loss["G_loss"] = gen_loss + adv_loss + dur_loss
        loss["G_gen_loss"] = gen_loss
        loss["G_adv_loss"] = adv_loss
        return loss


if __name__ == "__main__":
    key = jax.random.PRNGKey(0)
    k1, k2 = jax.random.split(key)

    # Small shapes consistent with the module: (batch, channels=1, samples).
    B, L = 2, 512
    y_hat = jax.random.normal(k1, (B, 1, L), dtype=jnp.float32)
    y = jax.random.normal(k2, (B, 1, L), dtype=jnp.float32)

    # Scaled-down STFT resolutions (module allows arbitrary scales).
    stft = MultiScaleSTFTLossPallas(
        n_ffts=(128, 256, 64),
        hop_lengths=(32, 64, 16),
        win_lengths=(96, 192, 48),
    )
    gen_loss = GeneratorLossPallas(stft_loss=stft, stft_loss_weight=0.5)

    out = gen_loss(stage="train", y_hat=y_hat, y=y)
    for leaf in jax.tree_util.tree_leaves(out):
        jax.block_until_ready(leaf)
    print("KERNEL_OK")
</pallas_src>

<mosaic_0001>
module attributes {stable_mosaic.version = 11 : i64} {
  func.func @_stft_loss_kernel(%arg0: i32, %arg1: memref<48x128xbf16, #tpu.memory_space<vmem>>, %arg2: memref<128x256xbf16, #tpu.memory_space<vmem>>, %arg3: memref<1x3x128xf32, #tpu.memory_space<vmem>>) attributes {dimension_semantics = [#tpu.dimension_semantics<parallel>], iteration_bounds = array<i64: 2>, scalar_prefetch = 0 : i64, scratch_operands = 0 : i64, tpu.core_type = #tpu.core_type<tc>, window_params = [{transform_indices = @transform_0, window_bounds = array<i64: 48, 128>}, {pipeline_mode = #tpu.pipeline_mode<synchronous>, transform_indices = @transform_1, window_bounds = array<i64: 128, 256>}, {transform_indices = @transform_2, window_bounds = array<i64: 1, 3, 128>}]} {
    %c0 = arith.constant 0 : index
    %c0_0 = arith.constant 0 : index
    %0 = vector.load %arg1[%c0, %c0_0] : memref<48x128xbf16, #tpu.memory_space<vmem>>, vector<48x128xbf16>
    %c0_1 = arith.constant 0 : index
    %c0_2 = arith.constant 0 : index
    %1 = vector.load %arg2[%c0_1, %c0_2] : memref<128x256xbf16, #tpu.memory_space<vmem>>, vector<128x256xbf16>
    %cst = arith.constant dense<0.000000e+00> : vector<48x256xf32>
    %2 = tpu.matmul %0, %1, %cst {dimension_numbers = #tpu.dot_dimension_numbers<[1], [0], [0], [1], [0, 0, 1, 1], [], []>} : vector<48x128xbf16>, vector<128x256xbf16>, vector<48x256xf32> -> vector<48x256xf32>
    %3 = vector.extract_strided_slice %2 {offsets = [0, 0], sizes = [24, 256], strides = [1, 1]} : vector<48x256xf32> to vector<24x256xf32>
    %4 = vector.extract_strided_slice %2 {offsets = [24, 0], sizes = [24, 256], strides = [1, 1]} : vector<48x256xf32> to vector<24x256xf32>
    %5 = vector.extract_strided_slice %3 {offsets = [0, 0], sizes = [24, 128], strides = [1, 1]} : vector<24x256xf32> to vector<24x128xf32>
    %6 = vector.extract_strided_slice %3 {offsets = [0, 128], sizes = [24, 128], strides = [1, 1]} : vector<24x256xf32> to vector<24x128xf32>
    %7 = vector.extract_strided_slice %4 {offsets = [0, 0], sizes = [24, 128], strides = [1, 1]} : vector<24x256xf32> to vector<24x128xf32>
    %8 = vector.extract_strided_slice %4 {offsets = [0, 128], sizes = [24, 128], strides = [1, 1]} : vector<24x256xf32> to vector<24x128xf32>
    %9 = arith.mulf %5, %5 : vector<24x128xf32>
    %10 = arith.mulf %6, %6 : vector<24x128xf32>
    %11 = arith.addf %9, %10 : vector<24x128xf32>
    %cst_3 = arith.constant 9.99999993E-9 : f32
    %12 = vector.broadcast %cst_3 : f32 to vector<24x128xf32>
    %13 = arith.maximumf %11, %12 : vector<24x128xf32>
    %14 = arith.mulf %7, %7 : vector<24x128xf32>
    %15 = arith.mulf %8, %8 : vector<24x128xf32>
    %16 = arith.addf %14, %15 : vector<24x128xf32>
    %cst_4 = arith.constant 9.99999993E-9 : f32
    %17 = vector.broadcast %cst_4 : f32 to vector<24x128xf32>
    %18 = arith.maximumf %16, %17 : vector<24x128xf32>
    %19 = math.sqrt %13 : vector<24x128xf32>
    %20 = math.sqrt %18 : vector<24x128xf32>
    %21 = tpu.reciprocal %13 : vector<24x128xf32> -> vector<24x128xf32>
    %22 = arith.mulf %18, %21 : vector<24x128xf32>
    %23 = math.log %22 : vector<24x128xf32>
    %24 = math.absf %23 : vector<24x128xf32>
    %cst_5 = arith.constant 5.000000e-01 : f32
    %25 = vector.broadcast %cst_5 : f32 to vector<24x128xf32>
    %26 = arith.mulf %25, %24 : vector<24x128xf32>
    %27 = arith.subf %20, %19 : vector<24x128xf32>
    %cst_6 = arith.constant dense<0.000000e+00> : vector<128xf32>
    %28 = vector.multi_reduction <add>, %26, %cst_6 [0] : vector<24x128xf32> to vector<128xf32>
    %29 = vector.shape_cast %28 : vector<128xf32> to vector<1x128xf32>
    %c0_7 = arith.constant 0 : index
    %c0_8 = arith.constant 0 : index
    %c0_9 = arith.constant 0 : index
    %30 = vector.load %arg3[%c0_7, %c0_8, %c0_9] : memref<1x3x128xf32, #tpu.memory_space<vmem>>, vector<1x1x128xf32>
    %31 = vector.shape_cast %30 : vector<1x1x128xf32> to vector<1x128xf32>
    %32 = vector.shape_cast %29 : vector<1x128xf32> to vector<1x1x128xf32>
    tpu.vector_store %arg3[%c0_7, %c0_8, %c0_9], %32 {strides = array<i32>} : memref<1x3x128xf32, #tpu.memory_space<vmem>>, vector<1x1x128xf32>,
    %33 = arith.mulf %27, %27 : vector<24x128xf32>
    %cst_10 = arith.constant dense<0.000000e+00> : vector<128xf32>
    %34 = vector.multi_reduction <add>, %33, %cst_10 [0] : vector<24x128xf32> to vector<128xf32>
    %35 = vector.shape_cast %34 : vector<128xf32> to vector<1x128xf32>
    %c0_11 = arith.constant 0 : index
    %c1 = arith.constant 1 : index
    %c0_12 = arith.constant 0 : index
    %36 = vector.load %arg3[%c0_11, %c1, %c0_12] : memref<1x3x128xf32, #tpu.memory_space<vmem>>, vector<1x1x128xf32>
    %37 = vector.shape_cast %36 : vector<1x1x128xf32> to vector<1x128xf32>
    %38 = vector.shape_cast %35 : vector<1x128xf32> to vector<1x1x128xf32>
    tpu.vector_store %arg3[%c0_11, %c1, %c0_12], %38 {strides = array<i32>} : memref<1x3x128xf32, #tpu.memory_space<vmem>>, vector<1x1x128xf32>,
    %cst_13 = arith.constant dense<0.000000e+00> : vector<128xf32>
    %39 = vector.multi_reduction <add>, %18, %cst_13 [0] : vector<24x128xf32> to vector<128xf32>
    %40 = vector.shape_cast %39 : vector<128xf32> to vector<1x128xf32>
    %c0_14 = arith.constant 0 : index
    %c2 = arith.constant 2 : index
    %c0_15 = arith.constant 0 : index
    %41 = vector.load %arg3[%c0_14, %c2, %c0_15] : memref<1x3x128xf32, #tpu.memory_space<vmem>>, vector<1x1x128xf32>
    %42 = vector.shape_cast %41 : vector<1x1x128xf32> to vector<1x128xf32>
    %43 = vector.shape_cast %40 : vector<1x128xf32> to vector<1x1x128xf32>
    tpu.vector_store %arg3[%c0_14, %c2, %c0_15], %43 {strides = array<i32>} : memref<1x3x128xf32, #tpu.memory_space<vmem>>, vector<1x1x128xf32>,
    return
  }
  func.func @transform_0(%arg0: i32) -> (i32, i32) {
    %c0_i32 = arith.constant 0 : i32
    %c0_i32_0 = arith.constant 0 : i32
    return %arg0, %c0_i32 : i32, i32
  }
  func.func @transform_1(%arg0: i32) -> (i32, i32) {
    %c0_i32 = arith.constant 0 : i32
    %c0_i32_0 = arith.constant 0 : i32
    %c0_i32_1 = arith.constant 0 : i32
    return %c0_i32, %c0_i32_0 : i32, i32
  }
  func.func @transform_2(%arg0: i32) -> (i32, i32, i32) {
    %c0_i32 = arith.constant 0 : i32
    %c0_i32_0 = arith.constant 0 : i32
    %c0_i32_1 = arith.constant 0 : i32
    return %arg0, %c0_i32, %c0_i32_0 : i32, i32, i32
  }
}

</mosaic_0001>

<llo_original>
// kernel: custom-call
$region0: #{custom-call}
  %s0 = inlined_call_operand.vmem [shape: f32[96,1,128], index: 0, kind: output, shape index: {}]

// kernel: _stft_loss_single.1
$region0: #{_stft_loss_single.1}
  #allocation0 [shape = 'u32[]', space=smem, size = 0x4, offset = 0x4, fixed_abs, tag = 'smem constant byte address 0x4 - core index']
  #allocation1 [shape = 'u32[72,128]{1,0:T(1,128)}', space=vmem, size = 0x9000, scoped, tag = 'internal scratch']
  %s0 = inlined_call_operand.vmem [shape: bf16[96,128], index: 0, kind: input, shape index: {}]
  %s1 = inlined_call_operand.vmem [shape: bf16[128,256], index: 1, kind: input, shape index: {}]
  %s2 = inlined_call_operand.vmem [shape: f32[2,3,128], index: 2, kind: output, shape index: {}]
  %s3 = sld [smem:[#allocation0]]
  $region41: #{_stft_loss_single.1} parent=0
    _
  %s5 = ssub.s32 1, %s3
  %s6 = scalar_select 0, %s5, %s3
  loop: start=0, step=1, limit=4
  $region2: #{_stft_loss_single.1} parent=0 // loop_pre_header
    _
  $region3: #{_stft_loss_single.1} parent=0 // loop_header
    %s8 = sphi 0, %s12
    %p9 = scmp.ge.s32.totalorder %s8, 4
    %s18 = sphi 0, %s20
    %s21 = sphi 0, %s18
    %s22 = sphi 0, %s21
    %s38 = sphi 0, %s22
    %s42 = sphi 0, %s42
    %s44 = sphi 0, %s42
    %s45 = sphi 0, %s44
    %s59 = sphi 0, %s45
    %s65 = sphi 0, %s67
    %s68 = sphi 0, %s65
    %s69 = sphi 0, %s68
    %s85 = sphi 0, %s69
  $region4: #{_stft_loss_single.1} parent=0 // loop_header_branch
    %11 = sbr.rel (%p9) target = $region8
  $region5: #{_stft_loss_single.1} parent=0 // loop_body
    %s13 = ssub.s32 %s8, 1
    %s14 = ssub.s32 %s8, 2
    %s15 = sadd.s32 %s8, 1
    %s16 = ssub.s32 %s8, %s15
    %p17 = scmp.eq.s32.totalorder %s16, 0
    %s19 = sadd.s32 %s18, 1
    %s20 = scalar_select %p17, %s18, %s19
    %p23 = pneg %p17
    %p24 = scmp.eq.s32.totalorder %s8, 1
    %p25 = por %p23, %p24
    %p26 = scmp.ne.s32.totalorder %s18, %s21
    %p27 = scmp.eq.s32.totalorder %s8, 0
    %p28 = por %p26, %p27
    %p29 = scmp.ne.s32.totalorder %s18, %s21
    %p30 = scmp.eq.s32.totalorder %s13, 1
    %p31 = por %p29, %p30
    %p32 = scmp.ne.s32.totalorder %s21, %s22
    %p33 = scmp.eq.s32.totalorder %s13, 0
    %p34 = por %p32, %p33
    %p35 = scmp.ne.s32.totalorder %s21, %s22
    %p36 = scmp.eq.s32.totalorder %s14, 1
    %p37 = por %p35, %p36
    %p39 = scmp.ne.s32.totalorder %s22, %s38
    %p40 = scmp.eq.s32.totalorder %s14, 0
    %p41 = por %p39, %p40
    %s43 = sadd.s32 %s42, 1
    %p46 = scmp.eq.s32.totalorder %s8, 1
    %p47 = scmp.ne.s32.totalorder %s42, %s44
    %p48 = scmp.eq.s32.totalorder %s8, 0
    %p49 = por %p47, %p48
    %p50 = scmp.ne.s32.totalorder %s42, %s44
    %p51 = scmp.eq.s32.totalorder %s13, 1
    %p52 = por %p50, %p51
    %p53 = scmp.ne.s32.totalorder %s44, %s45
    %p54 = scmp.eq.s32.totalorder %s13, 0
    %p55 = por %p53, %p54
    %p56 = scmp.ne.s32.totalorder %s44, %s45
    %p57 = scmp.eq.s32.totalorder %s14, 1
    %p58 = por %p56, %p57
    %p60 = scmp.ne.s32.totalorder %s45, %s59
    %p61 = scmp.eq.s32.totalorder %s14, 0
    %p62 = por %p60, %p61
    %s63 = ssub.s32 %s8, %s15
    %p64 = scmp.eq.s32.totalorder %s63, 0
    %s66 = sadd.s32 %s65, 1
    %s67 = scalar_select %p64, %s65, %s66
    %p70 = pneg %p64
    %p71 = scmp.eq.s32.totalorder %s8, 1
    %p72 = por %p70, %p71
    %p73 = scmp.ne.s32.totalorder %s65, %s68
    %p74 = scmp.eq.s32.totalorder %s8, 0
    %p75 = por %p73, %p74
    %p76 = scmp.ne.s32.totalorder %s65, %s68
    %p77 = scmp.eq.s32.totalorder %s13, 1
    %p78 = por %p76, %p77
    %p79 = scmp.ne.s32.totalorder %s68, %s69
    %p80 = scmp.eq.s32.totalorder %s13, 0
    %p81 = por %p79, %p80
    %p82 = scmp.ne.s32.totalorder %s68, %s69
    %p83 = scmp.eq.s32.totalorder %s14, 1
    %p84 = por %p82, %p83
    %p86 = scmp.ne.s32.totalorder %s69, %s85
    %p87 = scmp.eq.s32.totalorder %s14, 0
    %p88 = por %p86, %p87
    %p89 = scmp.le.s32.totalorder 1, %s8
    %p90 = scmp.lt.s32.totalorder %s8, 3
    %p91 = pnand %p89, %p90
    %p92 = pneg %p91
    // Predicated region
    $region9: #{_stft_loss_single.1} parent=5 // pred_check
      _
    $region10: #{_stft_loss_single.1} parent=5 // pred_check_branch
      %94 = sbr.rel (%p91) target = $region12
    $region11: #{_stft_loss_single.1} parent=5 // pred_region
      %s95 = ssub.s32 %s8, 1
      // Predicated region
      $region13: #{_stft_loss_single.1} parent=11 // pred_check
        %p96 = pneg %p55
      $region14: #{_stft_loss_single.1} parent=11 // pred_check_branch
        %98 = sbr.rel (%p96) target = $region16
      $region15: #{_stft_loss_single.1} parent=11 // pred_region
        _
      $region16: #{_stft_loss_single.1} parent=11 // pred_fallthru
        _
    $region12: #{_stft_loss_single.1} parent=5 // pred_fallthru
      _
    %p99 = scmp.lt.s32.totalorder %s8, 2
    // Predicated region
    $region17: #{_stft_loss_single.1} parent=5 // pred_check
      %p100 = pneg %p99
    $region18: #{_stft_loss_single.1} parent=5 // pred_check_branch
      %102 = sbr.rel (%p100) target = $region20
    $region19: #{_stft_loss_single.1} parent=5 // pred_region
      // Predicated region
      $region21: #{_stft_loss_single.1} parent=19 // pred_check
        %p103 = pneg %p28
      $region22: #{_stft_loss_single.1} parent=19 // pred_check_branch
        %105 = sbr.rel (%p103) target = $region24
      $region23: #{_stft_loss_single.1} parent=19 // pred_region
        %s106 = smul.u32 6, %s8
        %p107 = scmp.lt.s32.totalorder %s106, 11
        %s108 = scalar_select %p107, %s106, 11
        %s109 = smul.addr %s108, 4
        %s110 = scalar_lea.vmem %s0, %s109
        %s111 = smul.u32 6, %s8
      $region24: #{_stft_loss_single.1} parent=19 // pred_fallthru
        _
    $region20: #{_stft_loss_single.1} parent=5 // pred_fallthru
      _
    %p112 = scmp.le.s32.totalorder 1, %s8
    %p113 = scmp.lt.s32.totalorder %s8, 3
    %p114 = pnand %p112, %p113
    %p115 = pneg %p114
    // Predicated region
    $region25: #{_stft_loss_single.1} parent=5 // pred_check
      _
    $region26: #{_stft_loss_single.1} parent=5 // pred_check_branch
      %117 = sbr.rel (%p114) target = $region28
    $region27: #{_stft_loss_single.1} parent=5 // pred_region
      %s118 = ssub.s32 %s8, 1
      %s119 = smul.u32 6, %s13
      %p120 = scmp.lt.s32.totalorder %s119, 11
      %s121 = scalar_select %p120, %s119, 11
      %s122 = smul.addr %s121, 4
      %s123 = scalar_lea.vmem %s0, %s122
      %p124 = pneg %p34
      %p125 = pneg %p31
      %p126 = pneg %p55
      %p127 = pneg %p52
      %p128 = pneg %p81
      %p129 = pneg %p78
      %p130 = scmp.lt.s32.totalorder %s13, 1
      %s131 = scalar_select %p130, %s13, 1
      %s132 = smul.addr %s131, 4
      %s133 = scalar_lea.vmem %s2, %s132
      %s134 = smul.u32 6, %s13
      %p135 = scmp.lt.s32.totalorder %s134, 11
      %s136 = scalar_select %p135, %s134, 11
      %s137 = smul.addr %s136, 4
      %s138 = scalar_lea.vmem %s0, %s137
      %s139 = smul.u32 6, %s13
      %p140 = scmp.lt.s32.totalorder %s13, 1
      %s141 = scalar_select %p140, %s13, 1
      %s142 = smul.addr %s141, 4
      %s143 = scalar_lea.vmem %s2, %s142
      %v144 = vld [vmem:[%s138] sm:$0xf]
      %v145 = vld [vmem:[%s138 + $0x4] sm:$0xf]
      %v146 = vld [vmem:[%s138 + $0x8] sm:$0xf]
      %v147 = vld [vmem:[%s138 + $0xc] sm:$0xf]
      %v148 = vld [vmem:[%s138 + $0x10] sm:$0xf]
      %v149 = vld [vmem:[%s138 + $0x14] sm:$0xf]
      %v150 = vld [vmem:[%s1] sm:$0xff]
      %v151 = vld [vmem:[%s1 + $0x8] sm:$0xff]
      %v152 = vld [vmem:[%s1 + $0x10] sm:$0xff]
      %v153 = vld [vmem:[%s1 + $0x18] sm:$0xff]
      %v154 = vld [vmem:[%s1 + $0x20] sm:$0xff]
      %v155 = vld [vmem:[%s1 + $0x28] sm:$0xff]
      %v156 = vld [vmem:[%s1 + $0x30] sm:$0xff]
      %v157 = vld [vmem:[%s1 + $0x38] sm:$0xff]
      %v158 = vld [vmem:[%s1 + $0x40] sm:$0xff]
      %v159 = vld [vmem:[%s1 + $0x48] sm:$0xff]
      %v160 = vld [vmem:[%s1 + $0x50] sm:$0xff]
      %v161 = vld [vmem:[%s1 + $0x58] sm:$0xff]
      %v162 = vld [vmem:[%s1 + $0x60] sm:$0xff]
      %v163 = vld [vmem:[%s1 + $0x68] sm:$0xff]
      %v164 = vld [vmem:[%s1 + $0x70] sm:$0xff]
      %v165 = vld [vmem:[%s1 + $0x78] sm:$0xff]
      %v172 = vunpack.c.l.b16 %v144
      %v173 = vunpack.c.l.b16 %v145
      %v174 = vunpack.c.l.b16 %v146
      %v175 = vunpack.c.l.b16 %v147
      %v176 = vunpack.c.l.b16 %v148
      %v177 = vunpack.c.l.b16 %v149
      %v178 = vpack.c.b16 %v173, %v172
      %v179 = vpack.c.b16 %v175, %v174
      %v180 = vpack.c.b16 %v177, %v176
      %v200 = vunpack.c.l.b16 %v150
      %v201 = vunpack.c.h.b16 %v150
      %v202 = vunpack.c.l.b16 %v151
      %v203 = vunpack.c.h.b16 %v151
      %v204 = vunpack.c.l.b16 %v152
      %v205 = vunpack.c.h.b16 %v152
      %v206 = vunpack.c.l.b16 %v153
      %v207 = vunpack.c.h.b16 %v153
      %v208 = vunpack.c.l.b16 %v154
      %v209 = vunpack.c.h.b16 %v154
      %v210 = vunpack.c.l.b16 %v155
      %v211 = vunpack.c.h.b16 %v155
      %v212 = vunpack.c.l.b16 %v156
      %v213 = vunpack.c.h.b16 %v156
      %v214 = vunpack.c.l.b16 %v157
      %v215 = vunpack.c.h.b16 %v157
      %v216 = vunpack.c.l.b16 %v158
      %v217 = vunpack.c.h.b16 %v158
      %v218 = vunpack.c.l.b16 %v159
      %v219 = vunpack.c.h.b16 %v159
      %v220 = vunpack.c.l.b16 %v160
      %v221 = vunpack.c.h.b16 %v160
      %v222 = vunpack.c.l.b16 %v161
      %v223 = vunpack.c.h.b16 %v161
      %v224 = vunpack.c.l.b16 %v162
      %v225 = vunpack.c.h.b16 %v162
      %v226 = vunpack.c.l.b16 %v163
      %v227 = vunpack.c.h.b16 %v163
      %v228 = vunpack.c.l.b16 %v164
      %v229 = vunpack.c.h.b16 %v164
      %v230 = vunpack.c.l.b16 %v165
      %v231 = vunpack.c.h.b16 %v165
      %v232 = vpack.c.b16 %v202, %v200
      %v233 = vpack.c.b16 %v203, %v201
      %v234 = vpack.c.b16 %v206, %v204
      %v235 = vpack.c.b16 %v207, %v205
      %v236 = vpack.c.b16 %v210, %v208
      %v237 = vpack.c.b16 %v211, %v209
      %v238 = vpack.c.b16 %v214, %v212
      %v239 = vpack.c.b16 %v215, %v213
      %v240 = vpack.c.b16 %v218, %v216
      %v241 = vpack.c.b16 %v219, %v217
      %v242 = vpack.c.b16 %v222, %v220
      %v243 = vpack.c.b16 %v223, %v221
      %v244 = vpack.c.b16 %v226, %v224
      %v245 = vpack.c.b16 %v227, %v225
      %v246 = vpack.c.b16 %v230, %v228
      %v247 = vpack.c.b16 %v231, %v229
      %264 = vmatpush.bf16.msra.mxu0 %v246
      %265 = vmatpush.bf16.msra.mxu0 %v244
      %266 = vmatpush.bf16.msra.mxu0 %v242
      %267 = vmatpush.bf16.msra.mxu0 %v240
      %268 = vmatpush.bf16.msra.mxu0 %v238
      %269 = vmatpush.bf16.msra.mxu0 %v236
      %270 = vmatpush.bf16.msra.mxu0 %v234
      %271 = vmatpush.bf16.msra.mxu0 %v232
      %272 = vmatmul.bf16.gmra.mxu0 %v178
      %v273 = vpop.f32.mrf.mxu0
      %v274 = vadd.f32 0.0, %v273
      %v275 = vpop.f32.mrf.mxu0
      %v276 = vadd.f32 0.0, %v275
      %277 = vmatmul.bf16.gmra.mxu0 %v179
      %v278 = vpop.f32.mrf.mxu0
      %v279 = vadd.f32 0.0, %v278
      %v280 = vpop.f32.mrf.mxu0
      %v281 = vadd.f32 0.0, %v280
      %282 = vmatmul.bf16.gmra.mxu0 %v180
      %v283 = vpop.f32.mrf.mxu0
      %v284 = vadd.f32 0.0, %v283
      %v285 = vpop.f32.mrf.mxu0
      %v286 = vadd.f32 0.0, %v285
      %287 = vdwg.mxu0
      %288 = vmatpush.bf16.msra.mxu0 %v247
      %289 = vmatpush.bf16.msra.mxu0 %v245
      %290 = vmatpush.bf16.msra.mxu0 %v243
      %291 = vmatpush.bf16.msra.mxu0 %v241
      %292 = vmatpush.bf16.msra.mxu0 %v239
      %293 = vmatpush.bf16.msra.mxu0 %v237
      %294 = vmatpush.bf16.msra.mxu0 %v235
      %295 = vmatpush.bf16.msra.mxu0 %v233
      %296 = vmatmul.bf16.gmra.mxu0 %v178
      %v297 = vpop.f32.mrf.mxu0
      %v298 = vadd.f32 0.0, %v297
      %v299 = vpop.f32.mrf.mxu0
      %v300 = vadd.f32 0.0, %v299
      %301 = vmatmul.bf16.gmra.mxu0 %v179
      %v302 = vpop.f32.mrf.mxu0
      %v303 = vadd.f32 0.0, %v302
      %v304 = vpop.f32.mrf.mxu0
      %v305 = vadd.f32 0.0, %v304
      %306 = vmatmul.bf16.gmra.mxu0 %v180
      %v307 = vpop.f32.mrf.mxu0
      %v308 = vadd.f32 0.0, %v307
      %v309 = vpop.f32.mrf.mxu0
      %v310 = vadd.f32 0.0, %v309
      %311 = vdwg.mxu0
      %v312 = vmul.f32 %v274, %v274
      %v313 = vmul.f32 %v276, %v276
      %v314 = vmul.f32 %v279, %v279
      %v315 = vmul.f32 %v298, %v298
      %v316 = vmul.f32 %v300, %v300
      %v317 = vmul.f32 %v303, %v303
      %v318 = vadd.f32 %v312, %v315
      %v319 = vadd.f32 %v313, %v316
      %v320 = vadd.f32 %v314, %v317
      %v321 = vmax.f32 %v318, 1e-08
      %v322 = vmax.f32 %v319, 1e-08
      %v323 = vmax.f32 %v320, 1e-08
      %v324 = vmul.f32 %v281, %v281
      %v325 = vmul.f32 %v284, %v284
      %v326 = vmul.f32 %v286, %v286
      %v327 = vmul.f32 %v305, %v305
      %v328 = vmul.f32 %v308, %v308
      %v329 = vmul.f32 %v310, %v310
      %v330 = vadd.f32 %v324, %v327
      %v331 = vadd.f32 %v325, %v328
      %v332 = vadd.f32 %v326, %v329
      %v333 = vmax.f32 %v330, 1e-08
      %v334 = vmax.f32 %v331, 1e-08
      %v335 = vmax.f32 %v332, 1e-08
      %v336 = vrsqrt.pop %v321
      %v337 = vmul.f32 %v336, %v321
      %v338 = vmul.f32 %v337, %v336
      %v339 = vmul.f32 0.5, %v338
      %v340 = vsub.f32 1.5, %v339
      %v341 = vmul.f32 %v336, %v340
      %v342 = vmul.f32 %v321, %v341
      %vm343 = vcmp.eq.f32.partialorder %v321, inf
      %v344 = vsel %vm343, %v321, %v342
      %vm345 = vcmp.eq.f32.partialorder %v321, 0.0
      %v346 = vand.u32 %v321, 2147483648
      %v347 = vsel %vm345, %v346, %v344
      %v348 = vrsqrt.pop %v322
      %v349 = vmul.f32 %v348, %v322
      %v350 = vmul.f32 %v349, %v348
      %v351 = vmul.f32 0.5, %v350
      %v352 = vsub.f32 1.5, %v351
      %v353 = vmul.f32 %v348, %v352
      %v354 = vmul.f32 %v322, %v353
      %vm355 = vcmp.eq.f32.partialorder %v322, inf
      %v356 = vsel %vm355, %v322, %v354
      %vm357 = vcmp.eq.f32.partialorder %v322, 0.0
      %v358 = vand.u32 %v322, 2147483648
      %v359 = vsel %vm357, %v358, %v356
      %v360 = vrsqrt.pop %v323
      %v361 = vmul.f32 %v360, %v323
      %v362 = vmul.f32 %v361, %v360
      %v363 = vmul.f32 0.5, %v362
      %v364 = vsub.f32 1.5, %v363
      %v365 = vmul.f32 %v360, %v364
      %v366 = vmul.f32 %v323, %v365
      %vm367 = vcmp.eq.f32.partialorder %v323, inf
      %v368 = vsel %vm367, %v323, %v366
      %vm369 = vcmp.eq.f32.partialorder %v323, 0.0
      %v370 = vand.u32 %v323, 2147483648
      %v371 = vsel %vm369, %v370, %v368
      %v372 = vrsqrt.pop %v333
      %v373 = vmul.f32 %v372, %v333
      %v374 = vmul.f32 %v373, %v372
      %v375 = vmul.f32 0.5, %v374
      %v376 = vsub.f32 1.5, %v375
      %v377 = vmul.f32 %v372, %v376
      %v378 = vmul.f32 %v333, %v377
      %vm379 = vcmp.eq.f32.partialorder %v333, inf
      %v380 = vsel %vm379, %v333, %v378
      %vm381 = vcmp.eq.f32.partialorder %v333, 0.0
      %v382 = vand.u32 %v333, 2147483648
      %v383 = vsel %vm381, %v382, %v380
      %v384 = vrsqrt.pop %v334
      %v385 = vmul.f32 %v384, %v334
      %v386 = vmul.f32 %v385, %v384
      %v387 = vmul.f32 0.5, %v386
      %v388 = vsub.f32 1.5, %v387
      %v389 = vmul.f32 %v384, %v388
      %v390 = vmul.f32 %v334, %v389
      %vm391 = vcmp.eq.f32.partialorder %v334, inf
      %v392 = vsel %vm391, %v334, %v390
      %vm393 = vcmp.eq.f32.partialorder %v334, 0.0
      %v394 = vand.u32 %v334, 2147483648
      %v395 = vsel %vm393, %v394, %v392
      %v396 = vrsqrt.pop %v335
      %v397 = vmul.f32 %v396, %v335
      %v398 = vmul.f32 %v397, %v396
      %v399 = vmul.f32 0.5, %v398
      %v400 = vsub.f32 1.5, %v399
      %v401 = vmul.f32 %v396, %v400
      %v402 = vmul.f32 %v335, %v401
      %vm403 = vcmp.eq.f32.partialorder %v335, inf
      %v404 = vsel %vm403, %v335, %v402
      %vm405 = vcmp.eq.f32.partialorder %v335, 0.0
      %v406 = vand.u32 %v335, 2147483648
      %v407 = vsel %vm405, %v406, %v404
      %v408 = vrcp.pop %v321
      %v409 = vmul.f32 %v321, %v408
      %v410 = vsub.f32 1.0, %v409
      %v411 = vmul.f32 %v408, %v410
      %v412 = vadd.f32 %v408, %v411
      %vm413 = vweird.f32 %v321
      %vm414 = vweird.f32 %v408
      %vm415 = vmor %vm413, %vm414
      %v416 = vsel %vm415, %v408, %v412
      %v417 = vand.u32 2147483647, %v321
      %vm418 = vcmp.eq.f32.partialorder %v417, 8.507059e+37
      %v419 = vand.u32 %v321, 2147483648
      %v420 = vor.u32 1.1754944e-38, %v419
      %v421 = vsel %vm418, %v420, %v416
      %v422 = vrcp.pop %v322
      %v423 = vmul.f32 %v322, %v422
      %v424 = vsub.f32 1.0, %v423
      %v425 = vmul.f32 %v422, %v424
      %v426 = vadd.f32 %v422, %v425
      %vm427 = vweird.f32 %v322
      %vm428 = vweird.f32 %v422
      %vm429 = vmor %vm427, %vm428
      %v430 = vsel %vm429, %v422, %v426
      %v431 = vand.u32 2147483647, %v322
      %vm432 = vcmp.eq.f32.partialorder %v431, 8.507059e+37
      %v433 = vand.u32 %v322, 2147483648
      %v434 = vor.u32 1.1754944e-38, %v433
      %v435 = vsel %vm432, %v434, %v430
      %v436 = vrcp.pop %v323
      %v437 = vmul.f32 %v323, %v436
      %v438 = vsub.f32 1.0, %v437
      %v439 = vmul.f32 %v436, %v438
      %v440 = vadd.f32 %v436, %v439
      %vm441 = vweird.f32 %v323
      %vm442 = vweird.f32 %v436
      %vm443 = vmor %vm441, %vm442
      %v444 = vsel %vm443, %v436, %v440
      %v445 = vand.u32 2147483647, %v323
      %vm446 = vcmp.eq.f32.partialorder %v445, 8.507059e+37
      %v447 = vand.u32 %v323, 2147483648
      %v448 = vor.u32 1.1754944e-38, %v447
      %v449 = vsel %vm446, %v448, %v444
      %v450 = vmul.f32 %v333, %v421
      %v451 = vmul.f32 %v334, %v435
      %v452 = vmul.f32 %v335, %v449
      %v453 = vlog2.pop %v450
      %v454 = vmul.f32 %v453, 0.6931472
      %v455 = vlog2.pop %v451
      %v456 = vmul.f32 %v455, 0.6931472
      %v457 = vlog2.pop %v452
      %v458 = vmul.f32 %v457, 0.6931472
      %v459 = vand.u32 2147483647, %v454
      %v460 = vand.u32 2147483647, %v456
      %v461 = vand.u32 2147483647, %v458
      %v462 = vmul.f32 %v459, 0.5
      %v463 = vmul.f32 %v460, 0.5
      %v464 = vmul.f32 %v461, 0.5
      %v465 = vsub.f32 %v383, %v347
      %v466 = vsub.f32 %v395, %v359
      %v467 = vsub.f32 %v407, %v371
      %v468 = vadd.f32 %v462, %v463
      %v469 = vadd.f32 %v468, %v464
      %v470 = vrot.slane %v469, 4
      %v471 = vadd.f32 %v469, %v470
      %v472 = vrot.slane %v471, 2
      %v473 = vadd.f32 %v471, %v472
      %v474 = vrot.slane %v473, 1
      %v475 = vadd.f32 %v473, %v474
      %476 = vst [vmem:[%s143] sm:$0x1] %v475
      %v477 = vmul.f32 %v465, %v465
      %v478 = vmul.f32 %v466, %v466
      %v479 = vmul.f32 %v467, %v467
      %v480 = vadd.f32 %v477, %v478
      %v481 = vadd.f32 %v480, %v479
      %v482 = vrot.slane %v481, 4
      %v483 = vadd.f32 %v481, %v482
      %v484 = vrot.slane %v483, 2
      %v485 = vadd.f32 %v483, %v484
      %v486 = vrot.slane %v485, 1
      %v487 = vadd.f32 %v485, %v486
      %488 = vst [vmem:[%s143 + $0x1] sm:$0x1] %v487
      %v489 = vadd.f32 %v333, %v334
      %v490 = vadd.f32 %v489, %v335
      %v491 = vrot.slane %v490, 4
      %v492 = vadd.f32 %v490, %v491
      %v493 = vrot.slane %v492, 2
      %v494 = vadd.f32 %v492, %v493
      %v495 = vrot.slane %v494, 1
      %v496 = vadd.f32 %v494, %v495
      %497 = vst [vmem:[%s143 + $0x2] sm:$0x1] %v496
      %p498 = scmp.lt.s32.totalorder %s13, 1
      %s499 = scalar_select %p498, %s13, 1
      %s500 = smul.addr %s499, 4
      %s501 = scalar_lea.vmem %s2, %s500
      // Predicated region
      $region29: #{_stft_loss_single.1} parent=27 // pred_check
        %p502 = pneg %p78
      $region30: #{_stft_loss_single.1} parent=27 // pred_check_branch
        %504 = sbr.rel (%p502) target = $region32
      $region31: #{_stft_loss_single.1} parent=27 // pred_region
        _
      $region32: #{_stft_loss_single.1} parent=27 // pred_fallthru
        _
    $region28: #{_stft_loss_single.1} parent=5 // pred_fallthru
      _
    %p505 = scmp.le.s32.totalorder 2, %s8
    // Predicated region
    $region33: #{_stft_loss_single.1} parent=5 // pred_check
      %p506 = pneg %p505
    $region34: #{_stft_loss_single.1} parent=5 // pred_check_branch
      %508 = sbr.rel (%p506) target = $region36
    $region35: #{_stft_loss_single.1} parent=5 // pred_region
      %s509 = ssub.s32 %s8, 2
      // Predicated region
      $region37: #{_stft_loss_single.1} parent=35 // pred_check
        %p510 = pneg %p84
      $region38: #{_stft_loss_single.1} parent=35 // pred_check_branch
        %512 = sbr.rel (%p510) target = $region40
      $region39: #{_stft_loss_single.1} parent=35 // pred_region
        %p513 = scmp.lt.s32.totalorder %s14, 1
        %s514 = scalar_select %p513, %s14, 1
        %s515 = smul.addr %s514, 4
        %s516 = scalar_lea.vmem %s2, %s515
      $region40: #{_stft_loss_single.1} parent=35 // pred_fallthru
        _
    $region36: #{_stft_loss_single.1} parent=5 // pred_fallthru
      _
  $region6: #{_stft_loss_single.1} parent=0 // loop_footer
    %s12 = sadd.s32 1, %s8
  $region7: #{_stft_loss_single.1} parent=0 // loop_footer_branch
    %7 = sbr.rel target = $region3
  $region8: #{_stft_loss_single.1} parent=0 // loop_exit
    _

</llo_original>
